<compile_context>
chip_gen: v7x
topology: tpu7x:2x2x1
jax: 0.10.0
libtpu: 0.0.40
codegen_flags: <defaults>
</compile_context>

<pallas_src>
import functools
import math

import jax
import jax.numpy as jnp
from jax import lax
from jax.experimental import pallas as pl
from jax.experimental.pallas import tpu as pltpu


def _round_up(x, m):
    return (x + m - 1) // m * m


# ---------------------------------------------------------------------------
# Path A: table resident in VMEM; gather via one-hot matmul on the MXU.
# ---------------------------------------------------------------------------
def _onehot_gather_kernel(ids_ref, table_ref, out_ref, *, scale):
    ids = ids_ref[...]                                        # (T, 1) int32
    t = ids.shape[0]
    vocab = table_ref.shape[0]
    col = lax.broadcasted_iota(jnp.int32, (t, vocab), 1)       # (T, vocab)
    onehot = (col == ids).astype(table_ref.dtype)              # exact 0/1 rows
    # One-hot gather on the MXU. (For bit-exact f32 parity one could request
    # precision=lax.Precision.HIGHEST; default precision is plenty for an
    # embedding lookup since the one-hot entries are exact.)
    acc = jnp.dot(onehot, table_ref[...], preferred_element_type=jnp.float32)
    out_ref[...] = (acc * scale).astype(out_ref.dtype)


# ---------------------------------------------------------------------------
# Path B: table stays in HBM; many outstanding row-gather DMAs per token block.
# ---------------------------------------------------------------------------
def _dma_gather_kernel(ids_ref, table_hbm, out_ref, stage_ref, sem,
                       *, block_t, nslots, scale):
    base = pl.program_id(0) * block_t

    def _issue(t):
        row = ids_ref[base + t]                                # scalar from SMEM
        pltpu.make_async_copy(table_hbm.at[row], stage_ref.at[t],
                              sem.at[t % nslots]).start()

    def _wait(t):
        # Descriptor only needs matching shapes/dtype to size the wait.
        pltpu.make_async_copy(table_hbm.at[0], stage_ref.at[t],
                              sem.at[t % nslots]).wait()

    nprime = min(nslots, block_t)

    def _prime(t, c):
        _issue(t)
        return c
    lax.fori_loop(0, nprime, _prime, 0)

    def _steady(t, c):
        _wait(t - nslots)          # slot about to be reused
        _issue(t)
        return c
    lax.fori_loop(nprime, block_t, _steady, 0)

    def _drain(t, c):
        _wait(t)
        return c
    lax.fori_loop(block_t - nprime, block_t, _drain, 0)

    out_ref[...] = (stage_ref[...].astype(jnp.float32) * scale).astype(out_ref.dtype)


# ---------------------------------------------------------------------------
# Wrapper
# ---------------------------------------------------------------------------
def input_embedding(input_ids, table, *, block_tokens=512,
                    table_vmem_budget=12 * 1024 * 1024, gather_dma_slots=8):
    """input_ids: int array [...], table: [vocab, d_model] -> [..., d_model]."""
    vocab, d_model = table.shape
    lead_shape = input_ids.shape
    n_tok = 1
    for s in lead_shape:
        n_tok *= int(s)
    scale = math.sqrt(d_model)

    # Clamp ids so an out-of-range token id cannot trigger an OOB gather/DMA.
    flat_ids = jnp.clip(input_ids.reshape(n_tok).astype(jnp.int32), 0, vocab - 1)

    itemsize = table.dtype.itemsize
    bytes_per_tok = d_model * itemsize
    # Keep the (double-buffered) output tile comfortably inside scoped VMEM.
    max_t_by_vmem = max(8, (4 * 1024 * 1024) // max(bytes_per_tok, 1))
    block_t = min(block_tokens, max_t_by_vmem, _round_up(n_tok, 8))
    block_t = _round_up(block_t, 8)                      # sublane-aligned token tile
    n_pad = _round_up(n_tok, block_t)
    if n_pad != n_tok:
        flat_ids = jnp.pad(flat_ids, (0, n_pad - n_tok))  # pad with valid id 0
    n_blocks = n_pad // block_t

    table_bytes = vocab * d_model * itemsize
    out_tile_bytes = block_t * d_model * itemsize
    out_shape = jax.ShapeDtypeStruct((n_pad, d_model), table.dtype)

    use_resident_table = table_bytes <= table_vmem_budget
    est_vmem = (table_bytes if use_resident_table else out_tile_bytes) \
        + 2 * out_tile_bytes + 2 * block_t * 4
    cp_kwargs = dict(dimension_semantics=("parallel",))
    if est_vmem > 12 * 1024 * 1024:
        cp_kwargs["vmem_limit_bytes"] = int(min(2 * est_vmem, 40 * 1024 * 1024))
    compiler_params = pltpu.CompilerParams(**cp_kwargs)

    if use_resident_table:
        # ---- Path A: whole table in VMEM (fetched from HBM once), MXU gather ----
        ids_2d = flat_ids.reshape(n_pad, 1)
        grid_spec = pltpu.PrefetchScalarGridSpec(
            num_scalar_prefetch=0,
            grid=(n_blocks,),
            in_specs=[
                pl.BlockSpec((block_t, 1), lambda i: (i, 0)),        # ids tile
                pl.BlockSpec((vocab, d_model), lambda i: (0, 0)),    # full table, resident
            ],
            out_specs=pl.BlockSpec((block_t, d_model), lambda i: (i, 0)),
        )
        flat_out = pl.pallas_call(
            functools.partial(_onehot_gather_kernel, scale=scale),
            out_shape=out_shape,
            grid_spec=grid_spec,
            compiler_params=compiler_params,
        )(ids_2d, table)
    else:
        # ---- Path B: table in HBM; pipelined per-row gather DMAs -----------------
        grid_spec = pltpu.PrefetchScalarGridSpec(
            num_scalar_prefetch=1,                                   # ids -> SMEM
            grid=(n_blocks,),
            in_specs=[pl.BlockSpec(memory_space=pl.ANY)],            # table stays in HBM
            out_specs=pl.BlockSpec((block_t, d_model), lambda i, ids: (i, 0)),
            scratch_shapes=[
                pltpu.VMEM((block_t, d_model), table.dtype),         # staged rows
                pltpu.SemaphoreType.DMA((gather_dma_slots,)),
            ],
        )
        flat_out = pl.pallas_call(
            functools.partial(_dma_gather_kernel, block_t=block_t,
                              nslots=gather_dma_slots, scale=scale),
            out_shape=out_shape,
            grid_spec=grid_spec,
            compiler_params=compiler_params,
        )(flat_ids, table)

    return flat_out[:n_tok].reshape(*lead_shape, d_model)


if __name__ == "__main__":
    vocab_size = 64
    d_model = 128
    B, S = 2, 8

    key = jax.random.PRNGKey(0)
    k_tab, k_ids = jax.random.split(key)

    # nn.Embedding default init ~ N(0, 1)
    table = jax.random.normal(k_tab, (vocab_size, d_model), dtype=jnp.float32)
    input_ids = jax.random.randint(k_ids, (B, S), 0, vocab_size, dtype=jnp.int32)

    out = jax.block_until_ready(input_embedding(input_ids, table))
    ref = table[input_ids] * math.sqrt(d_model)
    assert out.shape == (B, S, d_model)
    # Loose-ish rtol tolerates MXU default-precision f32 handling; any gather
    # (indexing) error would be O(1) and fail immediately.
    assert jnp.allclose(out, ref, rtol=1e-2, atol=1e-3), "mismatch vs reference"

    # Ragged token count (exercises token-block padding).
    ids2 = jax.random.randint(jax.random.PRNGKey(1), (3, 5), 0, vocab_size,
                              dtype=jnp.int32)
    out2 = jax.block_until_ready(input_embedding(ids2, table))
    ref2 = table[ids2] * math.sqrt(d_model)
    assert out2.shape == (3, 5, d_model)
    assert jnp.allclose(out2, ref2, rtol=1e-2, atol=1e-3), "mismatch (ragged) vs reference"

    print("KERNEL_OK")
</pallas_src>

<mosaic_0001>
module attributes {stable_mosaic.version = 11 : i64} {
  func.func @_onehot_gather_kernel(%arg0: i32, %arg1: memref<16x1xi32, #tpu.memory_space<vmem>>, %arg2: memref<64x128xf32, #tpu.memory_space<vmem>>, %arg3: memref<16x128xf32, #tpu.memory_space<vmem>>) attributes {dimension_semantics = [#tpu.dimension_semantics<parallel>], iteration_bounds = array<i64: 1>, scalar_prefetch = 0 : i64, scratch_operands = 0 : i64, tpu.core_type = #tpu.core_type<tc>, window_params = [{transform_indices = @transform_0, window_bounds = array<i64: 16, 1>}, {pipeline_mode = #tpu.pipeline_mode<synchronous>, transform_indices = @transform_1, window_bounds = array<i64: 64, 128>}, {transform_indices = @transform_2, window_bounds = array<i64: 16, 128>}]} {
    %c0 = arith.constant 0 : index
    %c0_0 = arith.constant 0 : index
    %0 = vector.load %arg1[%c0, %c0_0] : memref<16x1xi32, #tpu.memory_space<vmem>>, vector<16x1xi32>
    %1 = tpu.iota {dimensions = array<i32: 1>} : vector<16x64xi32>
    %2 = vector.broadcast %0 : vector<16x1xi32> to vector<16x64xi32>
    %3 = arith.cmpi eq, %1, %2 : vector<16x64xi32>
    %4 = arith.extui %3 : vector<16x64xi1> to vector<16x64xi32>
    %5 = arith.sitofp %4 : vector<16x64xi32> to vector<16x64xf32>
    %c0_1 = arith.constant 0 : index
    %c0_2 = arith.constant 0 : index
    %6 = vector.load %arg2[%c0_1, %c0_2] : memref<64x128xf32, #tpu.memory_space<vmem>>, vector<64x128xf32>
    %cst = arith.constant dense<0.000000e+00> : vector<16x128xf32>
    %7 = tpu.matmul %5, %6, %cst {dimension_numbers = #tpu.dot_dimension_numbers<[1], [0], [0], [1], [0, 0, 1, 1], [], []>} : vector<16x64xf32>, vector<64x128xf32>, vector<16x128xf32> -> vector<16x128xf32>
    %cst_3 = arith.constant 11.3137083 : f32
    %8 = vector.broadcast %cst_3 : f32 to vector<16x128xf32>
    %9 = arith.mulf %7, %8 : vector<16x128xf32>
    %c0_4 = arith.constant 0 : index
    %c0_5 = arith.constant 0 : index
    %10 = vector.load %arg3[%c0_4, %c0_5] : memref<16x128xf32, #tpu.memory_space<vmem>>, vector<16x128xf32>
    tpu.vector_store %arg3[%c0_4, %c0_5], %9 {strides = array<i32>} : memref<16x128xf32, #tpu.memory_space<vmem>>, vector<16x128xf32>,
    return
  }
  func.func @transform_0(%arg0: i32) -> (i32, i32) {
    %c0_i32 = arith.constant 0 : i32
    %c0_i32_0 = arith.constant 0 : i32
    return %arg0, %c0_i32 : i32, i32
  }
  func.func @transform_1(%arg0: i32) -> (i32, i32) {
    %c0_i32 = arith.constant 0 : i32
    %c0_i32_0 = arith.constant 0 : i32
    %c0_i32_1 = arith.constant 0 : i32
    return %c0_i32, %c0_i32_0 : i32, i32
  }
  func.func @transform_2(%arg0: i32) -> (i32, i32) {
    %c0_i32 = arith.constant 0 : i32
    %c0_i32_0 = arith.constant 0 : i32
    return %arg0, %c0_i32 : i32, i32
  }
}

</mosaic_0001>

<llo_original>
// kernel: tpu_custom_call.1
$region0: #{tpu_custom_call.1}
  #allocation0 [shape = 'u32[]', space=smem, size = 0x4, offset = 0x4, fixed_abs, tag = 'smem constant byte address 0x4 - core index']
  #allocation1 [shape = 'u32[144,128]{1,0:T(1,128)}', space=vmem, size = 0x12000, scoped, tag = 'internal scratch']
  %s0 = inlined_call_operand.vmem [shape: s32[16,1], index: 0, kind: input, shape index: {}]
  %s1 = inlined_call_operand.hbm [shape: f32[64,128], index: 1, kind: input, shape index: {}]
  %s2 = inlined_call_operand.hbm [shape: f32[16,128], index: 2, kind: output, shape index: {}]
  %s3 = sld [smem:[#allocation0]]
  $region22: #{tpu_custom_call.1} parent=0
    _
  %s5 = ssub.s32 1, %s3
  %s6 = scalar_select 0, %s5, %s3
  $region1: #{tpu_custom_call.1} parent=0
    #allocation2 [shape = 'u8[32768]{0}', space=vmem, size = 0x8000, scoped, tag = 'input window, operand 1, single buffered']
    #allocation3 [shape = 's32[1]{0}', space=sflag, size = 0x4, scoped, tag = 'scoped memory for tpu_custom_call.1']
    #allocation4 [shape = 's32[1]{0}', space=sflag, size = 0x4, scoped, tag = 'scoped memory for tpu_custom_call.1']
    #allocation5 [shape = 'u8[8192]{0}', space=vmem, size = 0x2000, scoped, tag = 'output window, operand 0, single buffered']
    %7 = vsyncpa [#allocation3], 0
    %8 = vsyncpa [#allocation4], 0
    // Predicated region
    $region2: #{tpu_custom_call.1} parent=1 // pred_check
      _
    $region3: #{tpu_custom_call.1} parent=1 // pred_check_branch
      %10 = sbr.rel (0) target = $region5
    $region4: #{tpu_custom_call.1} parent=1 // pred_region
      _
    $region5: #{tpu_custom_call.1} parent=1 // pred_fallthru
      _
    // Predicated region
    $region6: #{tpu_custom_call.1} parent=1 // pred_check
      _
    $region7: #{tpu_custom_call.1} parent=1 // pred_check_branch
      %12 = sbr.rel (0) target = $region9
    $region8: #{tpu_custom_call.1} parent=1 // pred_region
      %s14 = ssub.s32 1024, 1024
      %15 = vsyncadd [#allocation3], %s14
      %s16 = sshll.u32 [#allocation2], 4
      %s17 = int_to_ptr.vmem [resolvable:$true] %s16
      %22 = dma.hbm_to_vmem [thread:$0]  %s1, 1024, %s17, [#allocation3], 128, 128, 8
    $region9: #{tpu_custom_call.1} parent=1 // pred_fallthru
      _
    // Predicated region
    $region10: #{tpu_custom_call.1} parent=1 // pred_check
      _
    $region11: #{tpu_custom_call.1} parent=1 // pred_check_branch
      %24 = sbr.rel (0) target = $region13
    $region12: #{tpu_custom_call.1} parent=1 // pred_region
      %25 = dma.done [#allocation3], 1024
    $region13: #{tpu_custom_call.1} parent=1 // pred_fallthru
      _
    %v26 = vld [vmem:[%s0] sm:$0xff]
    %v27 = vld [vmem:[%s0 + $0x8] sm:$0xff]
    %v28 = vlaneseq
    %v29 = vand.u32 %v28, 127
    %30 = vset.pattern.permute.xlu0 0
    %31 = vperm.xlu0 %30, %v26
    %v32 = vpop.permute.xlu0 %31
    %33 = vset.pattern.permute.xlu0 0
    %34 = vperm.xlu0 %33, %v27
    %v35 = vpop.permute.xlu0 %34
    %vm36 = vcmp.eq.s32.totalorder %v29, %v32
    %vm37 = vcmp.eq.s32.totalorder %v29, %v35
    %v38 = vsel %vm36, 1, 0
    %v39 = vsel %vm37, 1, 0
    %v40 = vcvt.s32.f32 %v38
    %v41 = vcvt.s32.f32 %v39
    %v42 = vld [vmem:[#allocation2] sm:$0xff]
    %v43 = vld [vmem:[#allocation2 + $0x8] sm:$0xff]
    %v44 = vld [vmem:[#allocation2 + $0x10] sm:$0xff]
    %v45 = vld [vmem:[#allocation2 + $0x18] sm:$0xff]
    %v46 = vld [vmem:[#allocation2 + $0x20] sm:$0xff]
    %v47 = vld [vmem:[#allocation2 + $0x28] sm:$0xff]
    %v48 = vld [vmem:[#allocation2 + $0x30] sm:$0xff]
    %v49 = vld [vmem:[#allocation2 + $0x38] sm:$0xff]
    %vm50 = vcmask 523264
    %v52 = vsel %vm50, %v40, 0
    %v55 = vsel %vm50, %v41, 0
    %57 = vmatprep.subr.mxu0 0.0
    %58 = vmatpush1.msra.mxu0 %v42
    %59 = vmatprep.subr.mxu0 0.0
    %60 = vmatpush1.msra.mxu0 %v43
    %61 = vmatprep.subr.mxu0 0.0
    %62 = vmatpush1.msra.mxu0 %v44
    %63 = vmatprep.subr.mxu0 0.0
    %64 = vmatpush1.msra.mxu0 %v45
    %65 = vmatprep.subr.mxu0 0.0
    %66 = vmatpush1.msra.mxu0 %v46
    %67 = vmatprep.subr.mxu0 0.0
    %68 = vmatpush1.msra.mxu0 %v47
    %69 = vmatprep.subr.mxu0 0.0
    %70 = vmatpush1.msra.mxu0 %v48
    %71 = vmatprep.subr.mxu0 0.0
    %72 = vmatpush1.msra.mxu0 %v49
    %73 = vmatprep.subr.mxu0 0.0
    %74 = vmatpush1.msra.mxu0 0.0
    %75 = vmatprep.subr.mxu0 0.0
    %76 = vmatpush1.msra.mxu0 0.0
    %77 = vmatprep.subr.mxu0 0.0
    %78 = vmatpush1.msra.mxu0 0.0
    %79 = vmatprep.subr.mxu0 0.0
    %80 = vmatpush1.msra.mxu0 0.0
    %81 = vmatprep.subr.mxu0 0.0
    %82 = vmatpush1.msra.mxu0 0.0
    %83 = vmatprep.subr.mxu0 0.0
    %84 = vmatpush1.msra.mxu0 0.0
    %85 = vmatprep.subr.mxu0 0.0
    %86 = vmatpush1.msra.mxu0 0.0
    %87 = vmatprep.subr.mxu0 0.0
    %88 = vmatpush1.msra.mxu0 0.0
    %89 = vmatprep.subr.mxu0 0.0
    %90 = vmatpush1.msra.mxu0 0.0
    %91 = vmatprep.subr.mxu0 0.0
    %92 = vmatpush1.msra.mxu0 0.0
    %93 = vmatprep.subr.mxu0 0.0
    %94 = vmatpush1.msra.mxu0 0.0
    %95 = vmatprep.subr.mxu0 0.0
    %96 = vmatpush1.msra.mxu0 0.0
    %97 = vmatprep.subr.mxu0 0.0
    %98 = vmatpush1.msra.mxu0 0.0
    %99 = vmatprep.subr.mxu0 0.0
    %100 = vmatpush1.msra.mxu0 0.0
    %101 = vmatprep.subr.mxu0 0.0
    %102 = vmatpush1.msra.mxu0 0.0
    %103 = vmatprep.subr.mxu0 0.0
    %104 = vmatpush1.msra.mxu0 0.0
    %105 = vmatprep.subr.mxu0 0.0
    %106 = vmatpush1.msra.mxu0 0.0
    %107 = vmatprep.subr.mxu0 0.0
    %108 = vmatpush1.msra.mxu0 0.0
    %109 = vmatprep.subr.mxu0 0.0
    %110 = vmatpush1.msra.mxu0 0.0
    %111 = vmatprep.subr.mxu0 0.0
    %112 = vmatpush1.msra.mxu0 0.0
    %113 = vmatprep.subr.mxu0 0.0
    %114 = vmatpush1.msra.mxu0 0.0
    %115 = vmatprep.subr.mxu0 0.0
    %116 = vmatpush1.msra.mxu0 0.0
    %117 = vmatprep.subr.mxu0 0.0
    %118 = vmatpush1.msra.mxu0 0.0
    %119 = vmatprep.subr.mxu0 0.0
    %120 = vmatpush1.msra.mxu0 0.0
    %121 = vmatprep.mubr.f32.mxu0 0.0
    %122 = vmatmul.mubr.f32.gmra.mrb[0].mxu0 %v52
    %v123 = vpop.f32.mrb[0].mxu0
    %v124 = vadd.f32 0.0, %v123
    %v125 = vpop.f32.mrb[0].mxu0
    %126 = vmatprep.mubr.f32.mxu0 0.0
    %127 = vmatmul.mubr.f32.gmra.mrb[0].mxu0 %v55
    %v128 = vpop.f32.mrb[0].mxu0
    %v129 = vadd.f32 0.0, %v128
    %v130 = vpop.f32.mrb[0].mxu0
    %131 = vdwg.mxu0
    %v132 = vmul.f32 %v124, 11.313708
    %v133 = vmul.f32 %v129, 11.313708
    %134 = vst [vmem:[#allocation5] sm:$0xff] %v132
    %135 = vst [vmem:[#allocation5 + $0x8] sm:$0xff] %v133
    // Predicated region
    $region14: #{tpu_custom_call.1} parent=1 // pred_check
      _
    $region15: #{tpu_custom_call.1} parent=1 // pred_check_branch
      %137 = sbr.rel (0) target = $region17
    $region16: #{tpu_custom_call.1} parent=1 // pred_region
      %s139 = ssub.s32 256, 256
      %140 = vsyncadd [#allocation4], %s139
      %s141 = sshll.u32 [#allocation5], 4
      %s142 = int_to_ptr.vmem [resolvable:$true] %s141
      %147 = dma.vmem_to_hbm [thread:$0]  %s142, 256, %s2, [#allocation4], 128, 128, 8
    $region17: #{tpu_custom_call.1} parent=1 // pred_fallthru
      _
    // Predicated region
    $region18: #{tpu_custom_call.1} parent=1 // pred_check
      _
    $region19: #{tpu_custom_call.1} parent=1 // pred_check_branch
      %149 = sbr.rel (0) target = $region21
    $region20: #{tpu_custom_call.1} parent=1 // pred_region
      %150 = dma.done [#allocation4], 256
    $region21: #{tpu_custom_call.1} parent=1 // pred_fallthru
      _
    %151 = vsyncpa [#allocation3], 1
    %152 = vsyncpa [#allocation4], 1

</llo_original>
